<compile_context>
chip_gen: v5e
topology: v5e:2x2
jax: 0.10.0
libtpu: 0.0.40
codegen_flags: <defaults>
</compile_context>

<pallas_src>
import functools
import math

import jax
import jax.numpy as jnp
from jax.experimental import pallas as pl
from jax.experimental.pallas import tpu as pltpu


def _rope_kernel(inv_ref, phase_ref, cos_ref, sin_ref, *,
                 rows_per_tile, dedup, mscale):
    # inv_ref:   (1, CW) f32 per-lane inverse frequency * pack
    # phase_ref: (1, CW) f32 per-lane phase offset (lane_pos_offset * inv_freq)
    # cos_ref / sin_ref: (rows_per_tile, W) output tiles
    i = pl.program_id(0)
    cw = inv_ref.shape[-1]

    row = jax.lax.broadcasted_iota(jnp.int32, (rows_per_tile, cw), 0) + i * rows_per_tile
    freqs = row.astype(jnp.float32) * inv_ref[...] + phase_ref[...]

    c = jnp.cos(freqs)
    s = jnp.sin(freqs)
    if mscale != 1.0:
        c = c * mscale
        s = s * mscale
    c = c.astype(cos_ref.dtype)
    s = s.astype(sin_ref.dtype)

    if dedup:
        # Two halves of emb are identical: duplicate via two unmasked
        # lane-slice stores (cw == half is a multiple of 128 here).
        half = cw
        cos_ref[:, :half] = c
        cos_ref[:, half:] = c
        sin_ref[:, :half] = s
        sin_ref[:, half:] = s
    else:
        cos_ref[...] = c
        sin_ref[...] = s


def rope_cos_sin(seq_len, head_dim, *, base=10000, mscale=1.0, dtype=jnp.float32):
    """Compute (cos, sin) caches of shape (seq_len, head_dim) via Pallas."""
    assert head_dim % 2 == 0
    half = head_dim // 2

    # inv_freq exactly as in the PyTorch reference.
    inv_freq = 1.0 / (base ** (jnp.arange(0, head_dim, 2, dtype=jnp.float32) / head_dim))

    if head_dim % 256 == 0:
        # Wide heads: compute only half the lanes (real 2x EUP saving),
        # duplicate with two lane-slice stores in the kernel.
        dedup = True
        pack = 1
        W = head_dim
        cw = half
        inv_pack = inv_freq.reshape(1, half)
        phase = jnp.zeros((1, half), jnp.float32)
    else:
        # Lane-dense packing: pack positions per output row so the output
        # lane width is a multiple of 128 (unmasked vector stores).
        dedup = False
        pack = 128 // math.gcd(128, head_dim)      # power of two (1 if 128 | head_dim)
        W = pack * head_dim
        cw = W
        lane = jnp.arange(W)
        base_inv = inv_freq[(lane % head_dim) % half]            # per-lane inv_freq
        lane_off = (lane // head_dim).astype(jnp.float32)        # 0..pack-1
        inv_pack = (base_inv * float(pack)).reshape(1, W)        # exact: pack is 2^k
        phase = (lane_off * base_inv).reshape(1, W)

    total_rows = -(-seq_len // pack)
    dsize = jnp.dtype(dtype).itemsize
    # Row granularity: respect sublane packing of the output dtype.
    rg = max(8, 32 // dsize)

    # Tile rows: <= ~2 MiB per output tile (safe for v7x's 64 MiB VMEM with
    # 2 outputs x 2 buffers), but leave >= 4 grid steps when there is enough
    # work so both v7x TensorCores get >= 2 steps each (overlapped writeback).
    row_bytes = W * dsize
    cap_rows = max(rg, (2 * 1024 * 1024 // row_bytes) // rg * rg)
    quarter_rows = max(rg, (-(-total_rows // 4) + rg - 1) // rg * rg)
    rows_per_tile = min(cap_rows, quarter_rows)
    num_tiles = -(-total_rows // rows_per_tile)

    kernel = functools.partial(
        _rope_kernel, rows_per_tile=rows_per_tile, dedup=dedup, mscale=float(mscale))

    cost = pl.CostEstimate(
        flops=4 * total_rows * W,
        transcendentals=2 * total_rows * cw,
        bytes_accessed=2 * total_rows * W * dsize + 2 * cw * 4)

    cos_slab, sin_slab = pl.pallas_call(
        kernel,
        out_shape=(
            jax.ShapeDtypeStruct((total_rows, W), dtype),
            jax.ShapeDtypeStruct((total_rows, W), dtype),
        ),
        grid_spec=pltpu.PrefetchScalarGridSpec(
            num_scalar_prefetch=0,
            grid=(num_tiles,),
            in_specs=[
                pl.BlockSpec((1, cw), lambda i: (0, 0)),
                pl.BlockSpec((1, cw), lambda i: (0, 0)),
            ],
            out_specs=[
                pl.BlockSpec((rows_per_tile, W), lambda i: (i, 0)),
                pl.BlockSpec((rows_per_tile, W), lambda i: (i, 0)),
            ],
        ),
        compiler_params=pltpu.CompilerParams(
            dimension_semantics=("parallel",)),
        cost_estimate=cost,
    )(inv_pack, phase)

    if pack == 1:
        return cos_slab, sin_slab
    # Unpack the lane-dense slab (metadata-only reshape; slice only needed
    # when seq_len is not a multiple of pack).
    cos = cos_slab.reshape(total_rows * pack, head_dim)
    sin = sin_slab.reshape(total_rows * pack, head_dim)
    if total_rows * pack != seq_len:
        cos = cos[:seq_len]
        sin = sin[:seq_len]
    return cos, sin


class RoPE:
    """JAX mirror of the PyTorch RoPE module (cos/sin cache provider)."""

    def __init__(self, head_dim, max_position_embeddings=2048, base=10000,
                 cache_dtype=jnp.float32):
        self.head_dim = head_dim
        self.max_position_embeddings = max_position_embeddings
        self.base = base
        self.mscale = 1.0
        self.max_seq_len_cached = max_position_embeddings
        # cache_dtype=bf16 builds the cache directly in bf16 in-kernel
        # (halves HBM writeback) if consumers only ever take bf16.
        self.cos_cached, self.sin_cached = rope_cos_sin(
            max_position_embeddings, head_dim, base=base,
            mscale=self.mscale, dtype=cache_dtype)

    def __call__(self, seq_len, dtype=jnp.float32):
        if seq_len > self.max_seq_len_cached:
            # Matches the PyTorch module: extension rebuilds the cache in the
            # requested dtype.
            self.max_seq_len_cached = seq_len
            self.cos_cached, self.sin_cached = rope_cos_sin(
                seq_len, self.head_dim, base=self.base,
                mscale=self.mscale, dtype=dtype)
        cos = self.cos_cached[:seq_len]
        sin = self.sin_cached[:seq_len]
        if cos.dtype != dtype:
            cos = cos.astype(dtype)
            sin = sin.astype(dtype)
        return cos, sin


def _reference_cos_sin(seq_len, head_dim, base=10000, mscale=1.0):
    inv_freq = 1.0 / (base ** (jnp.arange(0, head_dim, 2, dtype=jnp.float32) / head_dim))
    t = jnp.arange(seq_len, dtype=jnp.float32)
    freqs = jnp.outer(t, inv_freq)
    emb = jnp.concatenate([freqs, freqs], axis=-1)
    return jnp.cos(emb) * mscale, jnp.sin(emb) * mscale


if __name__ == "__main__":
    # RoPE has no learned parameters; the PRNGKey is unused but kept by convention.
    _ = jax.random.PRNGKey(0)

    # Case 1: head_dim=32 (< 128) -> lane-packed output path, via the module.
    head_dim, max_pos, seq_len = 32, 64, 16
    rope = RoPE(head_dim=head_dim, max_position_embeddings=max_pos, base=10000)
    cos, sin = rope(seq_len, dtype=jnp.float32)
    jax.block_until_ready((cos, sin))
    ref_cos, ref_sin = _reference_cos_sin(seq_len, head_dim)
    assert cos.shape == (seq_len, head_dim) and sin.shape == (seq_len, head_dim)
    assert jnp.allclose(cos, ref_cos, atol=1e-4, rtol=1e-5)
    assert jnp.allclose(sin, ref_sin, atol=1e-4, rtol=1e-5)

    # Case 2: head_dim=128 -> direct full-width path (no pseudo-dedup).
    cos2, sin2 = rope_cos_sin(48, 128)
    jax.block_until_ready((cos2, sin2))
    ref_cos2, ref_sin2 = _reference_cos_sin(48, 128)
    assert jnp.allclose(cos2, ref_cos2, atol=1e-4, rtol=1e-5)
    assert jnp.allclose(sin2, ref_sin2, atol=1e-4, rtol=1e-5)

    # Case 3: head_dim=256 -> dedup path (half-width EUP, lane-slice stores),
    # with a partial last output block (40 rows, 16-row tiles).
    cos4, sin4 = rope_cos_sin(40, 256)
    jax.block_until_ready((cos4, sin4))
    ref_cos4, ref_sin4 = _reference_cos_sin(40, 256)
    assert jnp.allclose(cos4, ref_cos4, atol=1e-4, rtol=1e-5)
    assert jnp.allclose(sin4, ref_sin4, atol=1e-4, rtol=1e-5)

    # Case 4: non-divisor head_dim (48) and seq not a multiple of pack.
    cos5, sin5 = rope_cos_sin(60, 48)
    jax.block_until_ready((cos5, sin5))
    ref_cos5, ref_sin5 = _reference_cos_sin(60, 48)
    assert cos5.shape == (60, 48)
    assert jnp.allclose(cos5, ref_cos5, atol=1e-4, rtol=1e-5)
    assert jnp.allclose(sin5, ref_sin5, atol=1e-4, rtol=1e-5)

    # Case 5: cache extension beyond max_position_embeddings (bf16 output).
    cos3, sin3 = rope(96, dtype=jnp.bfloat16)
    jax.block_until_ready((cos3, sin3))
    assert cos3.shape == (96, head_dim) and cos3.dtype == jnp.bfloat16

    print("KERNEL_OK")
</pallas_src>

<mosaic_0001>
module attributes {stable_mosaic.version = 11 : i64} {
  func.func @_rope_kernel(%arg0: i32, %arg1: memref<1x128xf32, #tpu.memory_space<vmem>>, %arg2: memref<1x128xf32, #tpu.memory_space<vmem>>, %arg3: memref<8x128xf32, #tpu.memory_space<vmem>>, %arg4: memref<8x128xf32, #tpu.memory_space<vmem>>) attributes {dimension_semantics = [#tpu.dimension_semantics<parallel>], iteration_bounds = array<i64: 2>, scalar_prefetch = 0 : i64, scratch_operands = 0 : i64, tpu.core_type = #tpu.core_type<tc>, window_params = [{pipeline_mode = #tpu.pipeline_mode<synchronous>, transform_indices = @transform_0, window_bounds = array<i64: 1, 128>}, {pipeline_mode = #tpu.pipeline_mode<synchronous>, transform_indices = @transform_1, window_bounds = array<i64: 1, 128>}, {transform_indices = @transform_2, window_bounds = array<i64: 8, 128>}, {transform_indices = @transform_3, window_bounds = array<i64: 8, 128>}]} {
    %0 = tpu.iota {dimensions = array<i32: 0>} : vector<8x128xi32>
    %c8_i32 = arith.constant 8 : i32
    %1 = arith.muli %arg0, %c8_i32 : i32
    %2 = vector.broadcast %1 : i32 to vector<8x128xi32>
    %3 = arith.addi %0, %2 : vector<8x128xi32>
    %4 = arith.sitofp %3 : vector<8x128xi32> to vector<8x128xf32>
    %c0 = arith.constant 0 : index
    %c0_0 = arith.constant 0 : index
    %5 = vector.load %arg1[%c0, %c0_0] : memref<1x128xf32, #tpu.memory_space<vmem>>, vector<1x128xf32>
    %6 = vector.broadcast %5 : vector<1x128xf32> to vector<8x128xf32>
    %7 = arith.mulf %4, %6 : vector<8x128xf32>
    %c0_1 = arith.constant 0 : index
    %c0_2 = arith.constant 0 : index
    %8 = vector.load %arg2[%c0_1, %c0_2] : memref<1x128xf32, #tpu.memory_space<vmem>>, vector<1x128xf32>
    %9 = vector.broadcast %8 : vector<1x128xf32> to vector<8x128xf32>
    %10 = arith.addf %7, %9 : vector<8x128xf32>
    %11 = math.cos %10 : vector<8x128xf32>
    %12 = math.sin %10 : vector<8x128xf32>
    %c0_3 = arith.constant 0 : index
    %c0_4 = arith.constant 0 : index
    %13 = vector.load %arg3[%c0_3, %c0_4] : memref<8x128xf32, #tpu.memory_space<vmem>>, vector<8x128xf32>
    tpu.vector_store %arg3[%c0_3, %c0_4], %11 {strides = array<i32>} : memref<8x128xf32, #tpu.memory_space<vmem>>, vector<8x128xf32>,
    %c0_5 = arith.constant 0 : index
    %c0_6 = arith.constant 0 : index
    %14 = vector.load %arg4[%c0_5, %c0_6] : memref<8x128xf32, #tpu.memory_space<vmem>>, vector<8x128xf32>
    tpu.vector_store %arg4[%c0_5, %c0_6], %12 {strides = array<i32>} : memref<8x128xf32, #tpu.memory_space<vmem>>, vector<8x128xf32>,
    return
  }
  func.func @transform_0(%arg0: i32) -> (i32, i32) {
    %c0_i32 = arith.constant 0 : i32
    %c0_i32_0 = arith.constant 0 : i32
    %c0_i32_1 = arith.constant 0 : i32
    return %c0_i32, %c0_i32_0 : i32, i32
  }
  func.func @transform_1(%arg0: i32) -> (i32, i32) {
    %c0_i32 = arith.constant 0 : i32
    %c0_i32_0 = arith.constant 0 : i32
    %c0_i32_1 = arith.constant 0 : i32
    return %c0_i32, %c0_i32_0 : i32, i32
  }
  func.func @transform_2(%arg0: i32) -> (i32, i32) {
    %c0_i32 = arith.constant 0 : i32
    %c0_i32_0 = arith.constant 0 : i32
    return %arg0, %c0_i32 : i32, i32
  }
  func.func @transform_3(%arg0: i32) -> (i32, i32) {
    %c0_i32 = arith.constant 0 : i32
    %c0_i32_0 = arith.constant 0 : i32
    return %arg0, %c0_i32 : i32, i32
  }
}

</mosaic_0001>

<llo_original>
// kernel: tpu_custom_call.1
$region0: #{tpu_custom_call.1}
  #allocation0 [shape = 'u32[]', space=smem, size = 0x4, offset = 0x4, fixed_abs, tag = 'smem constant byte address 0x4 - core index']
  #allocation1 [shape = 'u32[72,128]{1,0:T(1,128)}', space=vmem, size = 0x9000, scoped, tag = 'internal scratch']
  %s0 = inlined_call_operand.hbm [shape: f32[1,128], index: 0, kind: input, shape index: {}]
  %s1 = inlined_call_operand.hbm [shape: f32[1,128], index: 1, kind: input, shape index: {}]
  %s2 = inlined_call_operand.hbm [shape: f32[16,128], index: 2, kind: output, shape index: {0}]
  %s3 = inlined_call_operand.hbm [shape: f32[16,128], index: 3, kind: output, shape index: {1}]
  %4 = xla_tuple %s2, %s3
  %s5 = sld [smem:[#allocation0]]
  $region57: #{tpu_custom_call.1} parent=0
    _
  %s7 = ssub.s32 1, %s5
  %s8 = scalar_select 0, %s7, %s5
  $region1: #{tpu_custom_call.1} parent=0
    #allocation2 [shape = 'u8[512]{0}', space=vmem, size = 0x400, scoped, tag = 'input window, operand 0, single buffered']
    #allocation3 [shape = 's32[2]{0}', space=sflag, size = 0x8, scoped, tag = 'scoped memory for tpu_custom_call.1']
    #allocation4 [shape = 's32[2]{0}', space=sflag, size = 0x8, scoped, tag = 'scoped memory for tpu_custom_call.1']
    #allocation5 [shape = 'u8[512]{0}', space=vmem, size = 0x400, scoped, tag = 'input window, operand 1, single buffered']
    #allocation6 [shape = 's32[1]{0}', space=sflag, size = 0x4, scoped, tag = 'scoped memory for tpu_custom_call.1']
    #allocation7 [shape = 'u8[8192]{0}', space=vmem, size = 0x2000, scoped, tag = 'output window, operand 0']
    #allocation8 [shape = 'u8[8192]{0}', space=vmem, size = 0x2000, scoped, tag = 'output window, operand 1']
    #allocation9 [shape = 's32[2]{0}', space=sflag, size = 0x8, scoped, tag = 'scoped memory for tpu_custom_call.1']
    %9 = vsyncpa [#allocation3], 0
    %10 = vsyncpa [#allocation6], 0
    %11 = vsyncpa [#allocation4], 0
    %s12 = scalar_lea.sflag [#allocation4], 1
    %13 = vsyncpa %s12, 0
    %14 = vsyncpa [#allocation9], 0
    %s15 = scalar_lea.sflag [#allocation9], 1
    %16 = vsyncpa %s15, 0
    loop: start=0, step=1, limit=4
    $region2: #{tpu_custom_call.1} parent=1 // loop_pre_header
      _
    $region3: #{tpu_custom_call.1} parent=1 // loop_header
      %s18 = sphi 0, %s22
      %p19 = scmp.ge.s32.totalorder %s18, 4
      %s26 = sphi 0, %s26
      %s28 = sphi 0, %s26
      %s29 = sphi 0, %s28
      %s43 = sphi 0, %s29
      %s47 = sphi 0, %s47
      %s49 = sphi 0, %s47
      %s50 = sphi 0, %s49
      %s64 = sphi 0, %s50
      %s70 = sphi 0, %s72
      %s73 = sphi 0, %s70
      %s74 = sphi 0, %s73
      %s90 = sphi 0, %s74
      %s96 = sphi 0, %s98
      %s99 = sphi 0, %s96
      %s100 = sphi 0, %s99
      %s116 = sphi 0, %s100
    $region4: #{tpu_custom_call.1} parent=1 // loop_header_branch
      %21 = sbr.rel (%p19) target = $region8
    $region5: #{tpu_custom_call.1} parent=1 // loop_body
      %s23 = ssub.s32 %s18, 1
      %s24 = ssub.s32 %s18, 2
      %s25 = sadd.s32 %s18, 1
      %s27 = sadd.s32 %s26, 1
      %p30 = scmp.eq.s32.totalorder %s18, 1
      %p31 = scmp.ne.s32.totalorder %s26, %s28
      %p32 = scmp.eq.s32.totalorder %s18, 0
      %p33 = por %p31, %p32
      %p34 = scmp.ne.s32.totalorder %s26, %s28
      %p35 = scmp.eq.s32.totalorder %s23, 1
      %p36 = por %p34, %p35
      %p37 = scmp.ne.s32.totalorder %s28, %s29
      %p38 = scmp.eq.s32.totalorder %s23, 0
      %p39 = por %p37, %p38
      %p40 = scmp.ne.s32.totalorder %s28, %s29
      %p41 = scmp.eq.s32.totalorder %s24, 1
      %p42 = por %p40, %p41
      %p44 = scmp.ne.s32.totalorder %s29, %s43
      %p45 = scmp.eq.s32.totalorder %s24, 0
      %p46 = por %p44, %p45
      %s48 = sadd.s32 %s47, 1
      %p51 = scmp.eq.s32.totalorder %s18, 1
      %p52 = scmp.ne.s32.totalorder %s47, %s49
      %p53 = scmp.eq.s32.totalorder %s18, 0
      %p54 = por %p52, %p53
      %p55 = scmp.ne.s32.totalorder %s47, %s49
      %p56 = scmp.eq.s32.totalorder %s23, 1
      %p57 = por %p55, %p56
      %p58 = scmp.ne.s32.totalorder %s49, %s50
      %p59 = scmp.eq.s32.totalorder %s23, 0
      %p60 = por %p58, %p59
      %p61 = scmp.ne.s32.totalorder %s49, %s50
      %p62 = scmp.eq.s32.totalorder %s24, 1
      %p63 = por %p61, %p62
      %p65 = scmp.ne.s32.totalorder %s50, %s64
      %p66 = scmp.eq.s32.totalorder %s24, 0
      %p67 = por %p65, %p66
      %s68 = ssub.s32 %s18, %s25
      %p69 = scmp.eq.s32.totalorder %s68, 0
      %s71 = sadd.s32 %s70, 1
      %s72 = scalar_select %p69, %s70, %s71
      %p75 = pneg %p69
      %p76 = scmp.eq.s32.totalorder %s18, 1
      %p77 = por %p75, %p76
      %p78 = scmp.ne.s32.totalorder %s70, %s73
      %p79 = scmp.eq.s32.totalorder %s18, 0
      %p80 = por %p78, %p79
      %p81 = scmp.ne.s32.totalorder %s70, %s73
      %p82 = scmp.eq.s32.totalorder %s23, 1
      %p83 = por %p81, %p82
      %p84 = scmp.ne.s32.totalorder %s73, %s74
      %p85 = scmp.eq.s32.totalorder %s23, 0
      %p86 = por %p84, %p85
      %p87 = scmp.ne.s32.totalorder %s73, %s74
      %p88 = scmp.eq.s32.totalorder %s24, 1
      %p89 = por %p87, %p88
      %p91 = scmp.ne.s32.totalorder %s74, %s90
      %p92 = scmp.eq.s32.totalorder %s24, 0
      %p93 = por %p91, %p92
      %s94 = ssub.s32 %s18, %s25
      %p95 = scmp.eq.s32.totalorder %s94, 0
      %s97 = sadd.s32 %s96, 1
      %s98 = scalar_select %p95, %s96, %s97
      %p101 = pneg %p95
      %p102 = scmp.eq.s32.totalorder %s18, 1
      %p103 = por %p101, %p102
      %p104 = scmp.ne.s32.totalorder %s96, %s99
      %p105 = scmp.eq.s32.totalorder %s18, 0
      %p106 = por %p104, %p105
      %p107 = scmp.ne.s32.totalorder %s96, %s99
      %p108 = scmp.eq.s32.totalorder %s23, 1
      %p109 = por %p107, %p108
      %p110 = scmp.ne.s32.totalorder %s99, %s100
      %p111 = scmp.eq.s32.totalorder %s23, 0
      %p112 = por %p110, %p111
      %p113 = scmp.ne.s32.totalorder %s99, %s100
      %p114 = scmp.eq.s32.totalorder %s24, 1
      %p115 = por %p113, %p114
      %p117 = scmp.ne.s32.totalorder %s100, %s116
      %p118 = scmp.eq.s32.totalorder %s24, 0
      %p119 = por %p117, %p118
      %p120 = scmp.le.s32.totalorder 1, %s18
      %p121 = scmp.lt.s32.totalorder %s18, 3
      %p122 = pnand %p120, %p121
      %p123 = pneg %p122
      // Predicated region
      $region9: #{tpu_custom_call.1} parent=5 // pred_check
        _
      $region10: #{tpu_custom_call.1} parent=5 // pred_check_branch
        %125 = sbr.rel (%p122) target = $region12
      $region11: #{tpu_custom_call.1} parent=5 // pred_region
        %s126 = ssub.s32 %s18, 1
        // Predicated region
        $region13: #{tpu_custom_call.1} parent=11 // pred_check
          %p127 = pneg %p39
        $region14: #{tpu_custom_call.1} parent=11 // pred_check_branch
          %129 = sbr.rel (%p127) target = $region16
        $region15: #{tpu_custom_call.1} parent=11 // pred_region
          %131 = vsyncadd [#allocation3], 0
          %s133 = sshll.u32 %s0, 4
          %s134 = int_to_ptr.hbm [resolvable:$true] %s133
          %s135 = sshll.u32 [#allocation2], 4
          %s136 = int_to_ptr.vmem [resolvable:$true] %s135
          %138 = dma.hbm_to_vmem [thread:$0]  %s134, 16, %s136, [#allocation3]
        $region16: #{tpu_custom_call.1} parent=11 // pred_fallthru
          _
        // Predicated region
        $region17: #{tpu_custom_call.1} parent=11 // pred_check
          %p139 = pneg %p60
        $region18: #{tpu_custom_call.1} parent=11 // pred_check_branch
          %141 = sbr.rel (%p139) target = $region20
        $region19: #{tpu_custom_call.1} parent=11 // pred_region
          %143 = vsyncadd [#allocation6], 0
          %s145 = sshll.u32 %s1, 4
          %s146 = int_to_ptr.hbm [resolvable:$true] %s145
          %s147 = sshll.u32 [#allocation5], 4
          %s148 = int_to_ptr.vmem [resolvable:$true] %s147
          %150 = dma.hbm_to_vmem [thread:$0]  %s146, 16, %s148, [#allocation6]
        $region20: #{tpu_custom_call.1} parent=11 // pred_fallthru
          _
      $region12: #{tpu_custom_call.1} parent=5 // pred_fallthru
        _
      %p151 = scmp.lt.s32.totalorder %s18, 2
      // Predicated region
      $region21: #{tpu_custom_call.1} parent=5 // pred_check
        %p152 = pneg %p151
      $region22: #{tpu_custom_call.1} parent=5 // pred_check_branch
        %154 = sbr.rel (%p152) target = $region24
      $region23: #{tpu_custom_call.1} parent=5 // pred_region
        _
      $region24: #{tpu_custom_call.1} parent=5 // pred_fallthru
        _
      %p155 = scmp.le.s32.totalorder 1, %s18
      %p156 = scmp.lt.s32.totalorder %s18, 3
      %p157 = pnand %p155, %p156
      %p158 = pneg %p157
      // Predicated region
      $region25: #{tpu_custom_call.1} parent=5 // pred_check
        _
      $region26: #{tpu_custom_call.1} parent=5 // pred_check_branch
        %160 = sbr.rel (%p157) target = $region28
      $region27: #{tpu_custom_call.1} parent=5 // pred_region
        %s161 = ssub.s32 %s18, 1
        // Predicated region
        $region29: #{tpu_custom_call.1} parent=27 // pred_check
          %p162 = pneg %p39
        $region30: #{tpu_custom_call.1} parent=27 // pred_check_branch
          %164 = sbr.rel (%p162) target = $region32
        $region31: #{tpu_custom_call.1} parent=27 // pred_region
          %166 = dma.done [#allocation3], 16
        $region32: #{tpu_custom_call.1} parent=27 // pred_fallthru
          _
        // Predicated region
        $region33: #{tpu_custom_call.1} parent=27 // pred_check
          %p167 = pneg %p60
        $region34: #{tpu_custom_call.1} parent=27 // pred_check_branch
          %169 = sbr.rel (%p167) target = $region36
        $region35: #{tpu_custom_call.1} parent=27 // pred_region
          %171 = dma.done [#allocation6], 16
        $region36: #{tpu_custom_call.1} parent=27 // pred_fallthru
          _
        %p172 = pneg %p39
        %p173 = pneg %p36
        %p174 = pneg %p60
        %p175 = pneg %p57
        %p176 = pneg %p86
        %p177 = pneg %p83
        %s178 = sand.u32 %s73, 1
        %s179 = scalar_lea.sflag [#allocation4], %s178
        %s180 = sand.u32 %s73, 1
        %s181 = smul.addr %s180, 8
        %s182 = scalar_lea.vmem [#allocation7], %s181
        %p183 = pneg %p112
        %p184 = pneg %p109
        %s185 = sand.u32 %s99, 1
        %s186 = scalar_lea.sflag [#allocation9], %s185
        %s187 = sand.u32 %s99, 1
        %s188 = smul.addr %s187, 8
        %s189 = scalar_lea.vmem [#allocation8], %s188
        %v190 = vlaneseq
        %v191 = vshrl.u32 %v190, 7
        %s192 = smul.u32 %s23, 8
        %v193 = vstv %s192
        %v194 = vadd.s32 %v191, %v193
        %v195 = vcvt.s32.f32 %v194
        %v196 = vld [vmem:[#allocation2] sm:$0x1]
        %v198 = vperm.slane %v196, 0
        %v200 = vmul.f32 %v195, %v198
        %v201 = vld [vmem:[#allocation5] sm:$0x1]
        %v203 = vperm.slane %v201, 0
        %v205 = vadd.f32 %v200, %v203
        %v206 = vand.u32 2147483647, %v205
        %vm207 = vcmp.le.f32.partialorder %v206, 0.7853982
        %vm208 = vcmp.lt.s32.totalorder %v205, 0
        %v209 = vand.u32 %v205, 2139095040
        %v210 = vshrl.u32 %v209, 23
        %v211 = vsub.s32 %v210, 127
        %v212 = vand.u32 2147483647, %v205
        %v213 = vand.u32 %v212, 8388607
        %v214 = vor.u32 %v213, 8388608
        %v215 = vsub.s32 0, %v214
        %v216 = vadd.s32 %v211, 1
        %vm217 = vcmp.gt.s32.totalorder %v216, 0
        %v218 = vsel %vm217, %v216, 0
        %v219 = vshrl.u32 %v218, 5
        %v220 = vand.u32 %v218, 31
        %v221 = vsub.s32 32, %v220
        %v222 = vshrl.u32 683565275, %v221
        %v223 = vshll.u32 683565275, %v220
        %v224 = vshrl.u32 2475754826, %v221
        %v225 = vor.u32 %v223, %v224
        %v226 = vshll.u32 2475754826, %v220
        %v227 = vshrl.u32 2131351028, %v221
        %v228 = vor.u32 %v226, %v227
        %v229 = vshll.u32 2131351028, %v220
        %v230 = vshrl.u32 2102212464, %v221
        %v231 = vor.u32 %v229, %v230
        %v232 = vshll.u32 2102212464, %v220
        %v233 = vshrl.u32 920167782, %v221
        %v234 = vor.u32 %v232, %v233
        %v235 = vshll.u32 920167782, %v220
        %v236 = vshrl.u32 1326507024, %v221
        %v237 = vor.u32 %v235, %v236
        %vm238 = vcmp.lt.s32.totalorder %v219, 1
        %vm239 = vcmp.lt.s32.totalorder %v219, 2
        %vm240 = vcmp.lt.s32.totalorder %v219, 3
        %vm241 = vcmp.lt.s32.totalorder %v219, 4
        %v242 = vsel %vm238, %v222, %v225
        %v243 = vsel %vm241, %v231, 2102212464
        %v244 = vsel %vm240, %v228, %v243
        %v245 = vsel %vm239, %v242, %v244
        %v246 = vsel %vm238, %v225, %v228
        %v247 = vsel %vm241, %v234, 920167782
        %v248 = vsel %vm240, %v231, %v247
        %v249 = vsel %vm239, %v246, %v248
        %v250 = vsel %vm238, %v228, %v231
        %v251 = vsel %vm241, %v237, 1326507024
        %v252 = vsel %vm240, %v234, %v251
        %v253 = vsel %vm239, %v250, %v252
        %v254 = vshll.u32 %v214, 8
        %v255 = vand.u32 %v254, 65535
        %v256 = vshrl.u32 %v254, 16
        %v257 = vand.u32 %v253, 65535
        %v258 = vshrl.u32 %v253, 16
        %v259 = vmul.u32 %v255, %v257
        %v260 = vmul.u32 %v255, %v258
        %v261 = vmul.u32 %v256, %v257
        %v262 = vmul.u32 %v256, %v258
        %v263 = vshll.u32 %v260, 16
        %v264 = vshrl.u32 %v260, 16
        %v265 = vshll.u32 %v261, 16
        %v266 = vshrl.u32 %v261, 16
        %vm267 = vc.u32 %v259, %v263
        %v268 = vsel %vm267, 1, 0
        %v269 = vadd.s32 %v259, %v263
        %v270 = vadd.s32 %v262, %v268
        %vm271 = vc.u32 %v269, %v265
        %v272 = vsel %vm271, 1, 0
        %v273 = vadd.s32 %v269, %v265
        %v274 = vadd.s32 %v270, %v272
        %v275 = vadd.s32 %v274, %v264
        %v276 = vadd.s32 %v275, %v266
        %v277 = vand.u32 %v254, 65535
        %v278 = vshrl.u32 %v254, 16
        %v279 = vand.u32 %v249, 65535
        %v280 = vshrl.u32 %v249, 16
        %v281 = vmul.u32 %v277, %v279
        %v282 = vmul.u32 %v277, %v280
        %v283 = vmul.u32 %v278, %v279
        %v284 = vmul.u32 %v278, %v280
        %v285 = vshll.u32 %v282, 16
        %v286 = vshrl.u32 %v282, 16
        %v287 = vshll.u32 %v283, 16
        %v288 = vshrl.u32 %v283, 16
        %vm289 = vc.u32 %v281, %v285
        %v290 = vsel %vm289, 1, 0
        %v291 = vadd.s32 %v281, %v285
        %v292 = vadd.s32 %v284, %v290
        %vm293 = vc.u32 %v291, %v287
        %v294 = vsel %vm293, 1, 0
        %v295 = vadd.s32 %v291, %v287
        %v296 = vadd.s32 %v292, %v294
        %v297 = vadd.s32 %v296, %v286
        %v298 = vadd.s32 %v297, %v288
        %v299 = vmul.u32 %v254, %v245
        %v300 = vadd.s32 %v276, %v295
        %vm301 = vc.u32 %v276, %v295
        %v302 = vadd.s32 %v298, 1
        %v303 = vsel %vm301, %v302, %v298
        %v304 = vadd.s32 %v299, %v303
        %v305 = vadd.s32 %v304, 536870912
        %v306 = vshrl.u32 %v305, 30
        %v307 = vshll.u32 %v306, 30
        %v308 = vsub.s32 %v304, %v307
        %vm309 = vcmp.lt.s32.totalorder %v308, 0
        %v310 = vsub.s32 0, %v308
        %v311 = vsel %vm309, %v310, %v308
        %v312 = vclz %v311
        %v313 = vsub.s32 %v312, 2
        %vm314 = vcmp.gt.s32.totalorder 0, %v313
        %v315 = vsel %vm314, 0, %v313
        %v316 = vsub.s32 32, %v315
        %v317 = vshll.u32 %v308, %v315
        %v318 = vshrl.u32 %v300, %v316
        %v319 = vor.u32 %v317, %v318
        %v320 = vsub.s32 4294967266, %v315
        %v321 = vadd.s32 %v320, 127
        %v322 = vshll.u32 %v321, 23
        %v323 = vor.u32 4788187, %v322
        %v324 = vand.u32 2147483647, %v323
        %v326 = vcvt.s32.f32 %v319
        %v327 = vmul.f32 %v326, %v324
        %v328 = vxor.u32 %v327, 2147483648
        %v329 = vsel %vm208, %v328, %v327
        %v330 = vsub.s32 4, %v306
        %v331 = vsel %vm208, %v330, %v306
        %v332 = vsel %vm207, %v205, %v329
        %v333 = vsel %vm207, 0, %v331
        %v334 = vmul.f32 %v332, %v332
        %v335 = vmul.f32 %v334, -0.001358992
        %v336 = vadd.f32 %v335, 0.041655596
        %v337 = vmul.f32 %v334, %v336
        %v338 = vadd.f32 %v337, -0.4999988
        %v339 = vmul.f32 %v334, %v338
        %v340 = vadd.f32 1.0, %v339
        %v341 = vmul.f32 %v332, %v332
        %v342 = vmul.f32 %v341, -0.00019511016
        %v343 = vadd.f32 %v342, 0.008332121
        %v344 = vmul.f32 %v341, %v343
        %v345 = vadd.f32 %v344, -0.16666654
        %v346 = vmul.f32 %v341, %v345
        %v347 = vadd.f32 %v346, 1.0
        %v348 = vmul.f32 %v347, %v332
        %vm349 = vweird.f32 %v205
        %v350 = vand.u32 %v333, 3
        %vm351 = vcmp.lt.s32.totalorder %v350, 2
        %vm352 = vcmp.eq.s32.totalorder %v350, 0
        %v353 = vxor.u32 %v348, 2147483648
        %v354 = vsel %vm352, %v340, %v353
        %vm355 = vcmp.eq.s32.totalorder %v350, 2
        %v356 = vxor.u32 %v340, 2147483648
        %v357 = vsel %vm355, %v356, %v348
        %v358 = vsel %vm351, %v354, %v357
        %v359 = vsel %vm349, nan, %v358
        %v360 = vand.u32 2147483647, %v205
        %vm361 = vcmp.le.f32.partialorder %v360, 0.7853982
        %vm362 = vcmp.lt.s32.totalorder %v205, 0
        %v363 = vand.u32 %v205, 2139095040
        %v364 = vshrl.u32 %v363, 23
        %v365 = vsub.s32 %v364, 127
        %v366 = vand.u32 2147483647, %v205
        %v367 = vand.u32 %v366, 8388607
        %v368 = vor.u32 %v367, 8388608
        %v369 = vsub.s32 0, %v368
        %v370 = vadd.s32 %v365, 1
        %vm371 = vcmp.gt.s32.totalorder %v370, 0
        %v372 = vsel %vm371, %v370, 0
        %v373 = vshrl.u32 %v372, 5
        %v374 = vand.u32 %v372, 31
        %v375 = vsub.s32 32, %v374
        %v376 = vshrl.u32 683565275, %v375
        %v377 = vshll.u32 683565275, %v374
        %v378 = vshrl.u32 2475754826, %v375
        %v379 = vor.u32 %v377, %v378
        %v380 = vshll.u32 2475754826, %v374
        %v381 = vshrl.u32 2131351028, %v375
        %v382 = vor.u32 %v380, %v381
        %v383 = vshll.u32 2131351028, %v374
        %v384 = vshrl.u32 2102212464, %v375
        %v385 = vor.u32 %v383, %v384
        %v386 = vshll.u32 2102212464, %v374
        %v387 = vshrl.u32 920167782, %v375
        %v388 = vor.u32 %v386, %v387
        %v389 = vshll.u32 920167782, %v374
        %v390 = vshrl.u32 1326507024, %v375
        %v391 = vor.u32 %v389, %v390
        %vm392 = vcmp.lt.s32.totalorder %v373, 1
        %vm393 = vcmp.lt.s32.totalorder %v373, 2
        %vm394 = vcmp.lt.s32.totalorder %v373, 3
        %vm395 = vcmp.lt.s32.totalorder %v373, 4
        %v396 = vsel %vm392, %v376, %v379
        %v397 = vsel %vm395, %v385, 2102212464
        %v398 = vsel %vm394, %v382, %v397
        %v399 = vsel %vm393, %v396, %v398
        %v400 = vsel %vm392, %v379, %v382
        %v401 = vsel %vm395, %v388, 920167782
        %v402 = vsel %vm394, %v385, %v401
        %v403 = vsel %vm393, %v400, %v402
        %v404 = vsel %vm392, %v382, %v385
        %v405 = vsel %vm395, %v391, 1326507024
        %v406 = vsel %vm394, %v388, %v405
        %v407 = vsel %vm393, %v404, %v406
        %v408 = vshll.u32 %v368, 8
        %v409 = vand.u32 %v408, 65535
        %v410 = vshrl.u32 %v408, 16
        %v411 = vand.u32 %v407, 65535
        %v412 = vshrl.u32 %v407, 16
        %v413 = vmul.u32 %v409, %v411
        %v414 = vmul.u32 %v409, %v412
        %v415 = vmul.u32 %v410, %v411
        %v416 = vmul.u32 %v410, %v412
        %v417 = vshll.u32 %v414, 16
        %v418 = vshrl.u32 %v414, 16
        %v419 = vshll.u32 %v415, 16
        %v420 = vshrl.u32 %v415, 16
        %vm421 = vc.u32 %v413, %v417
        %v422 = vsel %vm421, 1, 0
        %v423 = vadd.s32 %v413, %v417
        %v424 = vadd.s32 %v416, %v422
        %vm425 = vc.u32 %v423, %v419
        %v426 = vsel %vm425, 1, 0
        %v427 = vadd.s32 %v423, %v419
        %v428 = vadd.s32 %v424, %v426
        %v429 = vadd.s32 %v428, %v418
        %v430 = vadd.s32 %v429, %v420
        %v431 = vand.u32 %v408, 65535
        %v432 = vshrl.u32 %v408, 16
        %v433 = vand.u32 %v403, 65535
        %v434 = vshrl.u32 %v403, 16
        %v435 = vmul.u32 %v431, %v433
        %v436 = vmul.u32 %v431, %v434
        %v437 = vmul.u32 %v432, %v433
        %v438 = vmul.u32 %v432, %v434
        %v439 = vshll.u32 %v436, 16
        %v440 = vshrl.u32 %v436, 16
        %v441 = vshll.u32 %v437, 16
        %v442 = vshrl.u32 %v437, 16
        %vm443 = vc.u32 %v435, %v439
        %v444 = vsel %vm443, 1, 0
        %v445 = vadd.s32 %v435, %v439
        %v446 = vadd.s32 %v438, %v444
        %vm447 = vc.u32 %v445, %v441
        %v448 = vsel %vm447, 1, 0
        %v449 = vadd.s32 %v445, %v441
        %v450 = vadd.s32 %v446, %v448
        %v451 = vadd.s32 %v450, %v440
        %v452 = vadd.s32 %v451, %v442
        %v453 = vmul.u32 %v408, %v399
        %v454 = vadd.s32 %v430, %v449
        %vm455 = vc.u32 %v430, %v449
        %v456 = vadd.s32 %v452, 1
        %v457 = vsel %vm455, %v456, %v452
        %v458 = vadd.s32 %v453, %v457
        %v459 = vadd.s32 %v458, 536870912
        %v460 = vshrl.u32 %v459, 30
        %v461 = vshll.u32 %v460, 30
        %v462 = vsub.s32 %v458, %v461
        %vm463 = vcmp.lt.s32.totalorder %v462, 0
        %v464 = vsub.s32 0, %v462
        %v465 = vsel %vm463, %v464, %v462
        %v466 = vclz %v465
        %v467 = vsub.s32 %v466, 2
        %vm468 = vcmp.gt.s32.totalorder 0, %v467
        %v469 = vsel %vm468, 0, %v467
        %v470 = vsub.s32 32, %v469
        %v471 = vshll.u32 %v462, %v469
        %v472 = vshrl.u32 %v454, %v470
        %v473 = vor.u32 %v471, %v472
        %v474 = vsub.s32 4294967266, %v469
        %v475 = vadd.s32 %v474, 127
        %v476 = vshll.u32 %v475, 23
        %v477 = vor.u32 4788187, %v476
        %v478 = vand.u32 2147483647, %v477
        %v480 = vcvt.s32.f32 %v473
        %v481 = vmul.f32 %v480, %v478
        %v482 = vxor.u32 %v481, 2147483648
        %v483 = vsel %vm362, %v482, %v481
        %v484 = vsub.s32 4, %v460
        %v485 = vsel %vm362, %v484, %v460
        %v486 = vsel %vm361, %v205, %v483
        %v487 = vsel %vm361, 0, %v485
        %v488 = vmul.f32 %v486, %v486
        %v489 = vmul.f32 %v488, -0.001358992
        %v490 = vadd.f32 %v489, 0.041655596
        %v491 = vmul.f32 %v488, %v490
        %v492 = vadd.f32 %v491, -0.4999988
        %v493 = vmul.f32 %v488, %v492
        %v494 = vadd.f32 1.0, %v493
        %v495 = vmul.f32 %v486, %v486
        %v496 = vmul.f32 %v495, -0.00019511016
        %v497 = vadd.f32 %v496, 0.008332121
        %v498 = vmul.f32 %v495, %v497
        %v499 = vadd.f32 %v498, -0.16666654
        %v500 = vmul.f32 %v495, %v499
        %v501 = vadd.f32 %v500, 1.0
        %v502 = vmul.f32 %v501, %v486
        %vm503 = vweird.f32 %v205
        %v504 = vadd.s32 %v487, 3
        %v505 = vand.u32 %v504, 3
        %vm506 = vcmp.lt.s32.totalorder %v505, 2
        %vm507 = vcmp.eq.s32.totalorder %v505, 0
        %v508 = vxor.u32 %v502, 2147483648
        %v509 = vsel %vm507, %v494, %v508
        %vm510 = vcmp.eq.s32.totalorder %v505, 2
        %v511 = vxor.u32 %v494, 2147483648
        %v512 = vsel %vm510, %v511, %v502
        %v513 = vsel %vm506, %v509, %v512
        %v514 = vsel %vm503, nan, %v513
        %515 = vst [vmem:[%s182] sm:$0xff] %v359
        %516 = vst [vmem:[%s189] sm:$0xff] %v514
        %s517 = sand.u32 %s73, 1
        %s518 = scalar_lea.sflag [#allocation4], %s517
        %s519 = sand.u32 %s73, 1
        %s520 = smul.addr %s519, 8
        %s521 = scalar_lea.vmem [#allocation7], %s520
        %s522 = sand.u32 %s99, 1
        %s523 = scalar_lea.sflag [#allocation9], %s522
        %s524 = sand.u32 %s99, 1
        %s525 = smul.addr %s524, 8
        %s526 = scalar_lea.vmem [#allocation8], %s525
        // Predicated region
        $region37: #{tpu_custom_call.1} parent=27 // pred_check
          %p527 = pneg %p83
        $region38: #{tpu_custom_call.1} parent=27 // pred_check_branch
          %529 = sbr.rel (%p527) target = $region40
        $region39: #{tpu_custom_call.1} parent=27 // pred_region
          %531 = vsyncadd %s518, 0
          %s532 = smul.addr %s23, 8
          %s533 = scalar_lea.hbm %s2, %s532
          %s535 = sshll.u32 %s521, 4
          %s536 = int_to_ptr.vmem [resolvable:$true] %s535
          %s537 = sshll.u32 %s533, 4
          %s538 = int_to_ptr.hbm [resolvable:$true] %s537
          %540 = dma.vmem_to_hbm [thread:$0]  %s536, 128, %s538, %s518
        $region40: #{tpu_custom_call.1} parent=27 // pred_fallthru
          _
        // Predicated region
        $region41: #{tpu_custom_call.1} parent=27 // pred_check
          %p541 = pneg %p109
        $region42: #{tpu_custom_call.1} parent=27 // pred_check_branch
          %543 = sbr.rel (%p541) target = $region44
        $region43: #{tpu_custom_call.1} parent=27 // pred_region
          %545 = vsyncadd %s523, 0
          %s546 = smul.addr %s23, 8
          %s547 = scalar_lea.hbm %s3, %s546
          %s549 = sshll.u32 %s526, 4
          %s550 = int_to_ptr.vmem [resolvable:$true] %s549
          %s551 = sshll.u32 %s547, 4
          %s552 = int_to_ptr.hbm [resolvable:$true] %s551
          %554 = dma.vmem_to_hbm [thread:$0]  %s550, 128, %s552, %s523
        $region44: #{tpu_custom_call.1} parent=27 // pred_fallthru
          _
      $region28: #{tpu_custom_call.1} parent=5 // pred_fallthru
        _
      %p555 = scmp.le.s32.totalorder 2, %s18
      // Predicated region
      $region45: #{tpu_custom_call.1} parent=5 // pred_check
        %p556 = pneg %p555
      $region46: #{tpu_custom_call.1} parent=5 // pred_check_branch
        %558 = sbr.rel (%p556) target = $region48
      $region47: #{tpu_custom_call.1} parent=5 // pred_region
        %s559 = ssub.s32 %s18, 2
        // Predicated region
        $region49: #{tpu_custom_call.1} parent=47 // pred_check
          %p560 = pneg %p89
        $region50: #{tpu_custom_call.1} parent=47 // pred_check_branch
          %562 = sbr.rel (%p560) target = $region52
        $region51: #{tpu_custom_call.1} parent=47 // pred_region
          %s563 = sand.u32 %s74, 1
          %s564 = scalar_lea.sflag [#allocation4], %s563
          %s565 = sand.u32 %s74, 1
          %s566 = smul.addr %s565, 8
          %s567 = scalar_lea.vmem [#allocation7], %s566
          %569 = dma.done %s564, 128
        $region52: #{tpu_custom_call.1} parent=47 // pred_fallthru
          _
        // Predicated region
        $region53: #{tpu_custom_call.1} parent=47 // pred_check
          %p570 = pneg %p115
        $region54: #{tpu_custom_call.1} parent=47 // pred_check_branch
          %572 = sbr.rel (%p570) target = $region56
        $region55: #{tpu_custom_call.1} parent=47 // pred_region
          %s573 = sand.u32 %s100, 1
          %s574 = scalar_lea.sflag [#allocation9], %s573
          %s575 = sand.u32 %s100, 1
          %s576 = smul.addr %s575, 8
          %s577 = scalar_lea.vmem [#allocation8], %s576
          %579 = dma.done %s574, 128
        $region56: #{tpu_custom_call.1} parent=47 // pred_fallthru
          _
      $region48: #{tpu_custom_call.1} parent=5 // pred_fallthru
        _
    $region6: #{tpu_custom_call.1} parent=1 // loop_footer
      %s22 = sadd.s32 1, %s18
    $region7: #{tpu_custom_call.1} parent=1 // loop_footer_branch
      %17 = sbr.rel target = $region3
    $region8: #{tpu_custom_call.1} parent=1 // loop_exit
      _
    %580 = vsyncpa [#allocation3], 1
    %s581 = scalar_lea.sflag [#allocation3], 1
    %582 = vsyncpa %s581, 1
    %583 = vsyncpa [#allocation6], 1
    %584 = vsyncpa [#allocation4], 1
    %s585 = scalar_lea.sflag [#allocation4], 1
    %586 = vsyncpa %s585, 1
    %587 = vsyncpa [#allocation9], 1
    %s588 = scalar_lea.sflag [#allocation9], 1
    %589 = vsyncpa %s588, 1

</llo_original>
